<compile_context>
chip_gen: v5e
topology: v5e:2x2
jax: 0.10.0
libtpu: 0.0.40
codegen_flags: <defaults>
</compile_context>

<pallas_src>
import jax
import jax.numpy as jnp
from jax.experimental import pallas as pl
from jax.experimental.pallas import tpu as pltpu

INPUT_SIZE = 10
HIDDEN_SIZE = 20
OUTPUT_SIZE = 1


def _round_up(n, m):
    return ((n + m - 1) // m) * m


def _mlp_kernel(x_ref, w1_ref, b1_ref, w2_ref, b2_ref, o_ref):
    x = x_ref[...]                                   # [IN, TILE_B]  f32 (lane-dense)
    w1 = w1_ref[...]                                 # [HID, IN]     f32
    # fc1: W1 @ x -> [HID, TILE_B], f32 accumulation on the MXU.
    # x's contraction dim is its *leading* dim -> no implicit transpose.
    h = jax.lax.dot_general(
        w1, x, (((1,), (0,)), ((), ())),
        preferred_element_type=jnp.float32)
    # Bias (b1 is [HID, 1], broadcasts over the lane/batch axis) + ReLU,
    # both lane-dense in this layout.
    h = jnp.maximum(h + b1_ref[...], 0.0)
    # fc2: W2 @ h -> [OUT, TILE_B].
    out = jax.lax.dot_general(
        w2_ref[...], h, (((1,), (0,)), ((), ())),
        preferred_element_type=jnp.float32)
    o_ref[...] = (out + b2_ref[0, 0]).astype(o_ref.dtype)


def simple_net_forward_t(x_t, w1, b1, w2, b2, *, tile_b=32768):
    """Batch-on-lanes entry point.

    x_t: [INPUT_SIZE, B] f32 (batch on the last/lane axis);
    w1: [HIDDEN, INPUT]; b1: [HIDDEN]; w2: [OUT, HIDDEN]; b2: [OUT].
    Returns [OUTPUT_SIZE, B_pad] f32 (B_pad = B rounded up to the tile).
    """
    B = x_t.shape[1]
    # Tile the batch in multiples of 128 (lane width); don't over-pad tiny
    # batches, and keep the per-step x buffer at <= ~2 MiB f32 (v7x-safe).
    tile_b = max(128, min(_round_up(tile_b, 128), _round_up(B, 128)))
    b_pad = _round_up(B, tile_b)
    if b_pad != B:
        # Only triggers when B is not already a multiple of tile_b (e.g. tiny
        # demo batches).  For production sizes pick B as a multiple of tile_b.
        x_t = jnp.pad(x_t, ((0, 0), (0, b_pad - B)))

    w1 = w1.astype(jnp.float32)                       # [HID, IN]  stationary
    w2 = w2.astype(jnp.float32)                       # [OUT, HID] stationary
    b1_col = b1.astype(jnp.float32).reshape(HIDDEN_SIZE, 1)
    b2_sc = b2.astype(jnp.float32).reshape(1, 1)

    grid = (b_pad // tile_b,)
    flops = 2 * b_pad * (INPUT_SIZE * HIDDEN_SIZE + HIDDEN_SIZE * OUTPUT_SIZE)
    bytes_accessed = (b_pad * INPUT_SIZE * 4          # x (f32)
                      + b_pad * OUTPUT_SIZE * 4       # out (f32)
                      + w1.size * 4 + w2.size * 4
                      + (HIDDEN_SIZE + 1) * 4)        # biases

    out_t = pl.pallas_call(
        _mlp_kernel,
        out_shape=jax.ShapeDtypeStruct((OUTPUT_SIZE, b_pad), jnp.float32),
        grid=grid,
        in_specs=[
            pl.BlockSpec((INPUT_SIZE, tile_b), lambda i: (0, i)),        # x (lane-dense)
            pl.BlockSpec((HIDDEN_SIZE, INPUT_SIZE), lambda i: (0, 0)),   # W1 (stationary)
            pl.BlockSpec((HIDDEN_SIZE, 1), lambda i: (0, 0)),            # b1 (stationary)
            pl.BlockSpec((OUTPUT_SIZE, HIDDEN_SIZE), lambda i: (0, 0)),  # W2 (stationary)
            pl.BlockSpec(memory_space=pltpu.MemorySpace.SMEM),           # b2 scalar
        ],
        out_specs=pl.BlockSpec((OUTPUT_SIZE, tile_b), lambda i: (0, i)),
        compiler_params=pltpu.CompilerParams(
            dimension_semantics=("parallel",)),
        cost_estimate=pl.CostEstimate(
            flops=flops, transcendentals=0, bytes_accessed=bytes_accessed),
    )(x_t, w1, b1_col, w2, b2_sc)

    return out_t


def simple_net_forward(x, w1, b1, w2, b2, *, tile_b=32768):
    """PyTorch-layout convenience wrapper: x is [B, INPUT_SIZE] f32.

    NOTE: the transpose here is an extra pass over x; for peak throughput at
    large batch, produce x already in [INPUT_SIZE, B] layout and call
    simple_net_forward_t directly.
    """
    B = x.shape[0]
    out_t = simple_net_forward_t(x.T, w1, b1, w2, b2, tile_b=tile_b)
    # [OUT, b_pad] (lane-dense) -> [B, OUT]; .T on a [1, N] array is
    # metadata-only, the [:B] slice only copies when B was padded.
    return out_t.T[:B]


def init_params(key):
    """Deterministic init mimicking PyTorch nn.Linear default
    (U(-1/sqrt(fan_in), +1/sqrt(fan_in)))."""
    k1, k2, k3, k4 = jax.random.split(key, 4)
    bound1 = 1.0 / (INPUT_SIZE ** 0.5)
    bound2 = 1.0 / (HIDDEN_SIZE ** 0.5)
    w1 = jax.random.uniform(k1, (HIDDEN_SIZE, INPUT_SIZE), jnp.float32, -bound1, bound1)
    b1 = jax.random.uniform(k2, (HIDDEN_SIZE,), jnp.float32, -bound1, bound1)
    w2 = jax.random.uniform(k3, (OUTPUT_SIZE, HIDDEN_SIZE), jnp.float32, -bound2, bound2)
    b2 = jax.random.uniform(k4, (OUTPUT_SIZE,), jnp.float32, -bound2, bound2)
    return w1, b1, w2, b2


if __name__ == "__main__":
    key = jax.random.PRNGKey(0)
    k_params, k_x = jax.random.split(key)
    w1, b1, w2, b2 = init_params(k_params)

    batch = 8
    x = jax.random.normal(k_x, (batch, INPUT_SIZE), jnp.float32)

    out = simple_net_forward(x, w1, b1, w2, b2)
    out = jax.block_until_ready(out)

    # Pure-f32 reference (same semantics as the f32 PyTorch SimpleNet).
    ref = jnp.maximum(x @ w1.T + b1, 0.0) @ w2.T + b2

    assert out.shape == (batch, OUTPUT_SIZE)
    assert jnp.allclose(out, ref, atol=1e-4, rtol=1e-4), (out, ref)

    print("KERNEL_OK")
</pallas_src>

<mosaic_0001>
module attributes {stable_mosaic.version = 11 : i64} {
  func.func @_mlp_kernel(%arg0: i32, %arg1: memref<10x128xf32, #tpu.memory_space<vmem>>, %arg2: memref<20x10xf32, #tpu.memory_space<vmem>>, %arg3: memref<20x1xf32, #tpu.memory_space<vmem>>, %arg4: memref<1x20xf32, #tpu.memory_space<vmem>>, %arg5: memref<1x1xf32, #tpu.memory_space<smem>>, %arg6: memref<1x128xf32, #tpu.memory_space<vmem>>) attributes {dimension_semantics = [#tpu.dimension_semantics<parallel>], iteration_bounds = array<i64: 1>, scalar_prefetch = 0 : i64, scratch_operands = 0 : i64, tpu.core_type = #tpu.core_type<tc>, window_params = [{transform_indices = @transform_0, window_bounds = array<i64: 10, 128>}, {pipeline_mode = #tpu.pipeline_mode<synchronous>, transform_indices = @transform_1, window_bounds = array<i64: 20, 10>}, {pipeline_mode = #tpu.pipeline_mode<synchronous>, transform_indices = @transform_2, window_bounds = array<i64: 20, 1>}, {pipeline_mode = #tpu.pipeline_mode<synchronous>, transform_indices = @transform_3, window_bounds = array<i64: 1, 20>}, {transform_indices = @transform_4, window_bounds = array<i64: 1, 1>}, {transform_indices = @transform_5, window_bounds = array<i64: 1, 128>}]} {
    %c0 = arith.constant 0 : index
    %c0_0 = arith.constant 0 : index
    %0 = vector.load %arg1[%c0, %c0_0] : memref<10x128xf32, #tpu.memory_space<vmem>>, vector<10x128xf32>
    %c0_1 = arith.constant 0 : index
    %c0_2 = arith.constant 0 : index
    %1 = vector.load %arg2[%c0_1, %c0_2] : memref<20x10xf32, #tpu.memory_space<vmem>>, vector<20x10xf32>
    %cst = arith.constant dense<0.000000e+00> : vector<20x128xf32>
    %2 = tpu.matmul %1, %0, %cst {dimension_numbers = #tpu.dot_dimension_numbers<[1], [0], [0], [1], [0, 0, 1, 1], [], []>} : vector<20x10xf32>, vector<10x128xf32>, vector<20x128xf32> -> vector<20x128xf32>
    %c0_3 = arith.constant 0 : index
    %c0_4 = arith.constant 0 : index
    %3 = vector.load %arg3[%c0_3, %c0_4] : memref<20x1xf32, #tpu.memory_space<vmem>>, vector<20x1xf32>
    %4 = vector.broadcast %3 : vector<20x1xf32> to vector<20x128xf32>
    %5 = arith.addf %2, %4 : vector<20x128xf32>
    %cst_5 = arith.constant 0.000000e+00 : f32
    %6 = vector.broadcast %cst_5 : f32 to vector<20x128xf32>
    %7 = arith.maximumf %5, %6 : vector<20x128xf32>
    %c0_6 = arith.constant 0 : index
    %c0_7 = arith.constant 0 : index
    %8 = vector.load %arg4[%c0_6, %c0_7] : memref<1x20xf32, #tpu.memory_space<vmem>>, vector<1x20xf32>
    %cst_8 = arith.constant dense<0.000000e+00> : vector<1x128xf32>
    %9 = tpu.matmul %8, %7, %cst_8 {dimension_numbers = #tpu.dot_dimension_numbers<[1], [0], [0], [1], [0, 0, 1, 1], [], []>} : vector<1x20xf32>, vector<20x128xf32>, vector<1x128xf32> -> vector<1x128xf32>
    %c0_9 = arith.constant 0 : index
    %c0_10 = arith.constant 0 : index
    %10 = memref.load %arg5[%c0_9, %c0_10] : memref<1x1xf32, #tpu.memory_space<smem>>
    %11 = vector.broadcast %10 : f32 to vector<1x128xf32>
    %12 = arith.addf %9, %11 : vector<1x128xf32>
    %c0_11 = arith.constant 0 : index
    %c0_12 = arith.constant 0 : index
    %13 = vector.load %arg6[%c0_11, %c0_12] : memref<1x128xf32, #tpu.memory_space<vmem>>, vector<1x128xf32>
    tpu.vector_store %arg6[%c0_11, %c0_12], %12 {strides = array<i32>} : memref<1x128xf32, #tpu.memory_space<vmem>>, vector<1x128xf32>,
    return
  }
  func.func @transform_0(%arg0: i32) -> (i32, i32) {
    %c0_i32 = arith.constant 0 : i32
    %c0_i32_0 = arith.constant 0 : i32
    return %c0_i32, %arg0 : i32, i32
  }
  func.func @transform_1(%arg0: i32) -> (i32, i32) {
    %c0_i32 = arith.constant 0 : i32
    %c0_i32_0 = arith.constant 0 : i32
    %c0_i32_1 = arith.constant 0 : i32
    return %c0_i32, %c0_i32_0 : i32, i32
  }
  func.func @transform_2(%arg0: i32) -> (i32, i32) {
    %c0_i32 = arith.constant 0 : i32
    %c0_i32_0 = arith.constant 0 : i32
    %c0_i32_1 = arith.constant 0 : i32
    return %c0_i32, %c0_i32_0 : i32, i32
  }
  func.func @transform_3(%arg0: i32) -> (i32, i32) {
    %c0_i32 = arith.constant 0 : i32
    %c0_i32_0 = arith.constant 0 : i32
    %c0_i32_1 = arith.constant 0 : i32
    return %c0_i32, %c0_i32_0 : i32, i32
  }
  func.func @transform_4(%arg0: i32) -> (i32, i32) {
    %c0_i32 = arith.constant 0 : i32
    %c0_i32_0 = arith.constant 0 : i32
    %c0_i32_1 = arith.constant 0 : i32
    return %c0_i32, %c0_i32_0 : i32, i32
  }
  func.func @transform_5(%arg0: i32) -> (i32, i32) {
    %c0_i32 = arith.constant 0 : i32
    %c0_i32_0 = arith.constant 0 : i32
    return %c0_i32, %arg0 : i32, i32
  }
}

</mosaic_0001>

<llo_original>
// kernel: tpu_custom_call.1
$region0: #{tpu_custom_call.1}
  #allocation0 [shape = 'u32[]', space=smem, size = 0x4, offset = 0x4, fixed_abs, tag = 'smem constant byte address 0x4 - core index']
  #allocation1 [shape = 'u32[72,128]{1,0:T(1,128)}', space=vmem, size = 0x9000, scoped, tag = 'internal scratch']
  #allocation2 [shape = 'f32[1,1]{1,0:T(1,128)S(6)}', space=smem, size = 0x200, scoped, tag = 'scoped memory for tpu_custom_call.1']
  %s0 = inlined_call_operand.vmem [shape: f32[10,128], index: 0, kind: input, shape index: {}]
  %s1 = inlined_call_operand.vmem [shape: f32[20,10], index: 1, kind: input, shape index: {}]
  %s2 = inlined_call_operand.vmem [shape: f32[20,1], index: 2, kind: input, shape index: {}]
  %s3 = inlined_call_operand.vmem [shape: f32[1,20], index: 3, kind: input, shape index: {}]
  %s4 = inlined_call_operand.<no memory space> [shape: f32[1,1], index: 4, kind: input, shape index: {}]
  %s5 = inlined_call_operand.hbm [shape: f32[1,128], index: 5, kind: output, shape index: {}]
  %s6 = sld [smem:[#allocation0]]
  $region30: #{tpu_custom_call.1} parent=0
    _
  %s8 = ssub.s32 1, %s6
  %s9 = scalar_select 0, %s8, %s6
  %10 = sst [smem:[#allocation2]] %s4
  $region1: #{tpu_custom_call.1} parent=0
    #allocation3 [shape = 'u8[512]{0}', space=vmem, size = 0x400, scoped, tag = 'output window, operand 0, single buffered']
    #allocation4 [shape = 's32[1]{0}', space=sflag, size = 0x4, scoped, tag = 'scoped memory for tpu_custom_call.1']
    %11 = vsyncpa [#allocation4], 0
    // Predicated region
    $region2: #{tpu_custom_call.1} parent=1 // pred_check
      _
    $region3: #{tpu_custom_call.1} parent=1 // pred_check_branch
      %13 = sbr.rel (0) target = $region5
    $region4: #{tpu_custom_call.1} parent=1 // pred_region
      _
    $region5: #{tpu_custom_call.1} parent=1 // pred_fallthru
      _
    // Predicated region
    $region6: #{tpu_custom_call.1} parent=1 // pred_check
      _
    $region7: #{tpu_custom_call.1} parent=1 // pred_check_branch
      %15 = sbr.rel (0) target = $region9
    $region8: #{tpu_custom_call.1} parent=1 // pred_region
      _
    $region9: #{tpu_custom_call.1} parent=1 // pred_fallthru
      _
    // Predicated region
    $region10: #{tpu_custom_call.1} parent=1 // pred_check
      _
    $region11: #{tpu_custom_call.1} parent=1 // pred_check_branch
      %17 = sbr.rel (0) target = $region13
    $region12: #{tpu_custom_call.1} parent=1 // pred_region
      _
    $region13: #{tpu_custom_call.1} parent=1 // pred_fallthru
      _
    // Predicated region
    $region14: #{tpu_custom_call.1} parent=1 // pred_check
      _
    $region15: #{tpu_custom_call.1} parent=1 // pred_check_branch
      %19 = sbr.rel (0) target = $region17
    $region16: #{tpu_custom_call.1} parent=1 // pred_region
      _
    $region17: #{tpu_custom_call.1} parent=1 // pred_fallthru
      _
    // Predicated region
    $region18: #{tpu_custom_call.1} parent=1 // pred_check
      _
    $region19: #{tpu_custom_call.1} parent=1 // pred_check_branch
      %21 = sbr.rel (0) target = $region21
    $region20: #{tpu_custom_call.1} parent=1 // pred_region
      _
    $region21: #{tpu_custom_call.1} parent=1 // pred_fallthru
      _
    %v22 = vld [vmem:[%s0] sm:$0xff]
    %v23 = vld [vmem:[%s0 + $0x8] sm:$0x3]
    %v24 = vld [vmem:[%s1] sm:$0xff]
    %v25 = vld [vmem:[%s1 + $0x8] sm:$0xff]
    %v26 = vld [vmem:[%s1 + $0x10] sm:$0xf]
    %v27 = vld [vmem:[%s2] sm:$0xff]
    %v28 = vld [vmem:[%s2 + $0x8] sm:$0xff]
    %v29 = vld [vmem:[%s2 + $0x10] sm:$0xf]
    %31 = vset.pattern.permute.xlu0 0
    %32 = vperm.xlu0 %31, %v27
    %v33 = vpop.permute.xlu0 %32
    %36 = vset.pattern.permute.xlu0 0
    %37 = vperm.xlu0 %36, %v28
    %v38 = vpop.permute.xlu0 %37
    %41 = vset.pattern.permute.xlu0 0
    %42 = vperm.xlu0 %41, %v29
    %v43 = vpop.permute.xlu0 %42
    %vm45 = vcmask 80896
    %v47 = vsel %vm45, %v24, 0
    %v50 = vsel %vm45, %v25, 0
    %v53 = vsel %vm45, %v26, 0
    %vm55 = vcmask 1041408
    %v57 = vsel %vm55, %v23, 0
    %59 = vmatpush.msra.mxu0 0.0
    %60 = vmatpush.msra.mxu0 0.0
    %61 = vmatpush.msra.mxu0 0.0
    %62 = vmatpush.msra.mxu0 0.0
    %63 = vmatpush.msra.mxu0 0.0
    %64 = vmatpush.msra.mxu0 0.0
    %65 = vmatpush.msra.mxu0 0.0
    %66 = vmatpush.msra.mxu0 0.0
    %67 = vmatpush.msra.mxu0 0.0
    %68 = vmatpush.msra.mxu0 0.0
    %69 = vmatpush.msra.mxu0 0.0
    %70 = vmatpush.msra.mxu0 0.0
    %71 = vmatpush.msra.mxu0 0.0
    %72 = vmatpush.msra.mxu0 0.0
    %73 = vmatpush.msra.mxu0 %v57
    %74 = vmatpush.msra.mxu0 %v22
    %75 = vmatmul.f32.gmra.mxu0 %v47
    %v76 = vpop.f32.mrf.mxu0
    %v77 = vadd.f32 %v33, %v76
    %78 = vmatmul.f32.gmra.mxu0 %v50
    %v79 = vpop.f32.mrf.mxu0
    %v80 = vadd.f32 %v38, %v79
    %81 = vmatmul.f32.gmra.mxu0 %v53
    %v82 = vpop.f32.mrf.mxu0
    %v83 = vadd.f32 %v43, %v82
    %84 = vdwg.mxu0
    %v85 = vmax.f32 %v77, 0.0
    %v86 = vmax.f32 %v80, 0.0
    %v87 = vmax.f32 %v83, 0.0
    %v88 = vld [vmem:[%s3] sm:$0x1]
    %s89 = sld [smem:[#allocation2]]
    %v90 = vstv %s89
    %vm91 = vcmask 162816
    %v93 = vsel %vm91, %v88, 0
    %vm95 = vcmask 1043456
    %v97 = vsel %vm95, %v87, 0
    %99 = vmatpush.msra.mxu0 0.0
    %100 = vmatpush.msra.mxu0 0.0
    %101 = vmatpush.msra.mxu0 0.0
    %102 = vmatpush.msra.mxu0 0.0
    %103 = vmatpush.msra.mxu0 0.0
    %104 = vmatpush.msra.mxu0 0.0
    %105 = vmatpush.msra.mxu0 0.0
    %106 = vmatpush.msra.mxu0 0.0
    %107 = vmatpush.msra.mxu0 0.0
    %108 = vmatpush.msra.mxu0 0.0
    %109 = vmatpush.msra.mxu0 0.0
    %110 = vmatpush.msra.mxu0 0.0
    %111 = vmatpush.msra.mxu0 0.0
    %112 = vmatpush.msra.mxu0 %v97
    %113 = vmatpush.msra.mxu0 %v86
    %114 = vmatpush.msra.mxu0 %v85
    %115 = vmatmul.f32.gmra.mxu0 %v93
    %v116 = vpop.f32.mrf.mxu0
    %v117 = vadd.f32 %v90, %v116
    %118 = vdwg.mxu0
    %119 = vst [vmem:[#allocation3] sm:$0x1] %v117
    // Predicated region
    $region22: #{tpu_custom_call.1} parent=1 // pred_check
      _
    $region23: #{tpu_custom_call.1} parent=1 // pred_check_branch
      %121 = sbr.rel (0) target = $region25
    $region24: #{tpu_custom_call.1} parent=1 // pred_region
      %123 = vsyncadd [#allocation4], 0
      %s125 = sshll.u32 [#allocation3], 4
      %s126 = int_to_ptr.vmem [resolvable:$true] %s125
      %s127 = sshll.u32 %s5, 4
      %s128 = int_to_ptr.hbm [resolvable:$true] %s127
      %130 = dma.vmem_to_hbm [thread:$0]  %s126, 16, %s128, [#allocation4]
    $region25: #{tpu_custom_call.1} parent=1 // pred_fallthru
      _
    // Predicated region
    $region26: #{tpu_custom_call.1} parent=1 // pred_check
      _
    $region27: #{tpu_custom_call.1} parent=1 // pred_check_branch
      %132 = sbr.rel (0) target = $region29
    $region28: #{tpu_custom_call.1} parent=1 // pred_region
      %134 = dma.done [#allocation4], 16
    $region29: #{tpu_custom_call.1} parent=1 // pred_fallthru
      _
    %135 = vsyncpa [#allocation4], 1

</llo_original>
